<compile_context>
chip_gen: v7x
topology: tpu7x:2x2x1
jax: 0.10.0
libtpu: 0.0.40
codegen_flags: <defaults>
</compile_context>

<pallas_src>
import jax
import jax.numpy as jnp
from jax.experimental import pallas as pl
from jax.experimental.pallas import tpu as pltpu


def _round_up(x, m):
    return (x + m - 1) // m * m


_TB_MIN = 16  # bf16 packs 16 rows per sublane group -> keep tile heights multiples of 16


def make_classifier_kernel(n_layers, compute_dtype):
    """Kernel over one batch tile: n_layers Linear layers, ReLU between all but the last.

    Ref order: x_ref, (w0, b0), (w1, b1), ..., out_ref.
    x arrives in its HBM dtype (f32) and is cast to bf16 in-register (no separate XLA
    pad/cast pass).  Weights are bf16 (native MXU path), biases f32, accumulation f32
    via preferred_element_type.
    """

    def kernel(*refs):
        x_ref = refs[0]
        out_ref = refs[-1]
        param_refs = refs[1:-1]            # 2 * n_layers refs

        h = x_ref[...].astype(compute_dtype)          # f32 HBM stream -> bf16 in vregs
        for li in range(n_layers):
            w_ref = param_refs[2 * li]
            b_ref = param_refs[2 * li + 1]
            h = jnp.dot(h, w_ref[...], preferred_element_type=jnp.float32) + b_ref[...]
            if li < n_layers - 1:
                # nn.Dropout(0.1) is identity in eval mode; then ReLU.
                # TODO(synk): training-mode dropout would use pltpu.prng_random_bits.
                h = jnp.maximum(h, 0.0).astype(compute_dtype)   # back to bf16 for next MXU op
        out_ref[...] = h.astype(out_ref.dtype)

    return kernel


def prepare_classifier_params(params, compute_dtype=jnp.bfloat16):
    """Pad/cast weights & biases ONCE (cache the result across forward calls).

    params: list of (W [in, out] f32, b [1, out] f32) — first entry is the
            feature_extractor stand-in (Linear+ReLU), the rest are the predictor Linears.

    Only output feature dims are padded to multiples of 128 (lane-dense N / next-layer K);
    the raw input dim stays unpadded — the MXU handles an arbitrary contraction K, so x
    can be streamed with no pad copy.  Zero weight/bias padding keeps padded lanes exactly
    0 through ReLU, so correctness is preserved and the padded logit lanes are sliced off.
    """
    in_dim = params[0][0].shape[0]
    out_dim = params[-1][0].shape[1]
    n_pad = [_round_up(w.shape[1], 128) for w, _ in params]    # padded output dims per layer
    k_dims = [in_dim] + n_pad[:-1]                             # contraction dims per layer

    flat = []
    for li, (w, b) in enumerate(params):
        fi, fo = w.shape
        kp, np_ = k_dims[li], n_pad[li]
        w_p = jnp.zeros((kp, np_), compute_dtype).at[:fi, :fo].set(w.astype(compute_dtype))
        b_p = jnp.zeros((1, np_), jnp.float32).at[:, :fo].set(b.astype(jnp.float32))
        flat += [w_p, b_p]

    return dict(flat=tuple(flat), k_dims=tuple(k_dims), n_dims=tuple(n_pad),
                in_dim=in_dim, out_dim=out_dim, compute_dtype=compute_dtype)


def classifier_forward(x, prepared, *, tb=512):
    """Eval-mode forward of Classifier.  x: [B, in_dim] f32 -> [B, out_dim] f32 logits."""
    flat = prepared["flat"]
    k_dims, n_dims = prepared["k_dims"], prepared["n_dims"]
    in_dim, out_dim = prepared["in_dim"], prepared["out_dim"]
    compute_dtype = prepared["compute_dtype"]
    n_layers = len(n_dims)
    out_p = n_dims[-1]

    B, xd = x.shape
    assert xd == in_dim, (xd, in_dim)

    # ---- batch tile: multiples of 16, big enough to amortize the ~0.35 us per-step
    #      pipeline overhead, but guarantee >= 2 grid steps whenever the batch allows so
    #      the "parallel" batch axis actually uses both v7x TensorCores.
    b_ceil = _round_up(B, _TB_MIN)
    tb = max(_TB_MIN, min(_round_up(tb, _TB_MIN), b_ceil))
    if b_ceil >= 2 * _TB_MIN and pl.cdiv(B, tb) < 2:
        tb = _round_up(pl.cdiv(B, 2), _TB_MIN)

    # Large batches stream x unpadded (a partial last block is handled by Pallas); only a
    # tiny batch smaller than one tile gets row-padded so the block never exceeds the array.
    x_in, b_arr = x, B
    if B < tb:
        x_in = jnp.zeros((tb, in_dim), x.dtype).at[:B].set(x)
        b_arr = tb
    grid = (pl.cdiv(b_arr, tb),)

    # x / out streamed per batch tile; weights & biases resident (same block every step).
    # NOTE: the resident weights could be single-buffered (pipeline_mode=pl.Buffered(1));
    # left at the default since they total only a few hundred KB.
    in_specs = [pl.BlockSpec((tb, in_dim), lambda i: (i, 0))]
    for li in range(n_layers):
        in_specs.append(pl.BlockSpec((k_dims[li], n_dims[li]), lambda i: (0, 0)))
        in_specs.append(pl.BlockSpec((1, n_dims[li]), lambda i: (0, 0)))
    out_spec = pl.BlockSpec((tb, out_p), lambda i: (i, 0))

    # Advisory cost hint for XLA scheduling around the custom call.
    flops = 2 * b_arr * sum(k_dims[i] * n_dims[i] for i in range(n_layers))
    bytes_accessed = (x_in.size * x_in.dtype.itemsize
                      + sum(a.size * a.dtype.itemsize for a in flat)
                      + b_arr * out_p * jnp.dtype(compute_dtype).itemsize)
    cost = pl.CostEstimate(flops=flops, transcendentals=0, bytes_accessed=bytes_accessed)

    out_padded = pl.pallas_call(
        make_classifier_kernel(n_layers, compute_dtype),
        out_shape=jax.ShapeDtypeStruct((b_arr, out_p), compute_dtype),   # bf16 writeback
        grid=grid,
        in_specs=in_specs,
        out_specs=out_spec,
        compiler_params=pltpu.CompilerParams(
            dimension_semantics=("parallel",),        # shard batch tiles across v7x's 2 TCs
            vmem_limit_bytes=48 * 1024 * 1024),       # explicit (v5e default is only 16 MiB)
        cost_estimate=cost,
    )(x_in, *flat)

    # Drop batch padding and zero-padded logit lanes; cast the tiny [B, out_dim] slice to f32.
    return out_padded[:B, :out_dim].astype(jnp.float32)


def init_linear(key, fan_in, fan_out):
    """Deterministic init mimicking torch.nn.Linear default: U(-1/sqrt(fan_in), 1/sqrt(fan_in))."""
    kw, kb = jax.random.split(key)
    bound = 1.0 / float(fan_in) ** 0.5
    w = jax.random.uniform(kw, (fan_in, fan_out), jnp.float32, -bound, bound)
    b = jax.random.uniform(kb, (1, fan_out), jnp.float32, -bound, bound)
    return w, b


def _reference_forward(x, params):
    """Pure-jnp f32 reference (eval mode)."""
    h = x
    for li, (w, b) in enumerate(params):
        h = h @ w + b
        if li < len(params) - 1:
            h = jnp.maximum(h, 0.0)
    return h


if __name__ == "__main__":
    key = jax.random.PRNGKey(0)

    B, in_dim = 32, 64
    hidden_drug_dim = 256
    cls_dims_list = [128, 64]
    dims = [hidden_drug_dim] + cls_dims_list + [2]   # predictor dims: 256 -> 128 -> 64 -> 2

    keys = jax.random.split(key, 2 + len(dims) - 1)
    x = jax.random.normal(keys[0], (B, in_dim), dtype=jnp.float32)

    # feature_extractor stand-in (Linear + ReLU) followed by the predictor Linear layers.
    # TODO(synk): the real feature_extractor is an external module passed into Classifier.
    params = [init_linear(keys[1], in_dim, hidden_drug_dim)]
    for i in range(len(dims) - 1):
        params.append(init_linear(keys[2 + i], dims[i], dims[i + 1]))

    prepared = prepare_classifier_params(params)     # pad/cast once, reuse every call
    out = classifier_forward(x, prepared)
    jax.block_until_ready(out)
    assert out.shape == (B, 2)
    assert out.dtype == jnp.float32

    # Correctness check against the f32 reference (loose tol: bf16 weights/activations/output).
    ref = _reference_forward(x, params)
    assert jnp.allclose(out, ref, atol=0.2, rtol=0.05), (out, ref)

    print("KERNEL_OK")
</pallas_src>

<mosaic_0001>
module attributes {stable_mosaic.version = 11 : i64} {
  func.func @kernel(%arg0: i32, %arg1: memref<16x64xf32, #tpu.memory_space<vmem>>, %arg2: memref<64x256xbf16, #tpu.memory_space<vmem>>, %arg3: memref<1x256xf32, #tpu.memory_space<vmem>>, %arg4: memref<256x128xbf16, #tpu.memory_space<vmem>>, %arg5: memref<1x128xf32, #tpu.memory_space<vmem>>, %arg6: memref<128x128xbf16, #tpu.memory_space<vmem>>, %arg7: memref<1x128xf32, #tpu.memory_space<vmem>>, %arg8: memref<128x128xbf16, #tpu.memory_space<vmem>>, %arg9: memref<1x128xf32, #tpu.memory_space<vmem>>, %arg10: memref<16x128xbf16, #tpu.memory_space<vmem>>) attributes {dimension_semantics = [#tpu.dimension_semantics<parallel>], iteration_bounds = array<i64: 2>, scalar_prefetch = 0 : i64, scratch_operands = 0 : i64, tpu.core_type = #tpu.core_type<tc>, window_params = [{transform_indices = @transform_0, window_bounds = array<i64: 16, 64>}, {pipeline_mode = #tpu.pipeline_mode<synchronous>, transform_indices = @transform_1, window_bounds = array<i64: 64, 256>}, {pipeline_mode = #tpu.pipeline_mode<synchronous>, transform_indices = @transform_2, window_bounds = array<i64: 1, 256>}, {pipeline_mode = #tpu.pipeline_mode<synchronous>, transform_indices = @transform_3, window_bounds = array<i64: 256, 128>}, {pipeline_mode = #tpu.pipeline_mode<synchronous>, transform_indices = @transform_4, window_bounds = array<i64: 1, 128>}, {pipeline_mode = #tpu.pipeline_mode<synchronous>, transform_indices = @transform_5, window_bounds = array<i64: 128, 128>}, {pipeline_mode = #tpu.pipeline_mode<synchronous>, transform_indices = @transform_6, window_bounds = array<i64: 1, 128>}, {pipeline_mode = #tpu.pipeline_mode<synchronous>, transform_indices = @transform_7, window_bounds = array<i64: 128, 128>}, {pipeline_mode = #tpu.pipeline_mode<synchronous>, transform_indices = @transform_8, window_bounds = array<i64: 1, 128>}, {transform_indices = @transform_9, window_bounds = array<i64: 16, 128>}]} {
    %c0 = arith.constant 0 : index
    %c0_0 = arith.constant 0 : index
    %0 = vector.load %arg1[%c0, %c0_0] : memref<16x64xf32, #tpu.memory_space<vmem>>, vector<16x64xf32>
    %1 = arith.truncf %0 : vector<16x64xf32> to vector<16x64xbf16>
    %c0_1 = arith.constant 0 : index
    %c0_2 = arith.constant 0 : index
    %2 = vector.load %arg2[%c0_1, %c0_2] : memref<64x256xbf16, #tpu.memory_space<vmem>>, vector<64x256xbf16>
    %cst = arith.constant dense<0.000000e+00> : vector<16x256xf32>
    %3 = tpu.matmul %1, %2, %cst {dimension_numbers = #tpu.dot_dimension_numbers<[1], [0], [0], [1], [0, 0, 1, 1], [], []>} : vector<16x64xbf16>, vector<64x256xbf16>, vector<16x256xf32> -> vector<16x256xf32>
    %c0_3 = arith.constant 0 : index
    %c0_4 = arith.constant 0 : index
    %4 = vector.load %arg3[%c0_3, %c0_4] : memref<1x256xf32, #tpu.memory_space<vmem>>, vector<1x256xf32>
    %5 = vector.broadcast %4 : vector<1x256xf32> to vector<16x256xf32>
    %6 = arith.addf %3, %5 : vector<16x256xf32>
    %cst_5 = arith.constant 0.000000e+00 : f32
    %7 = vector.broadcast %cst_5 : f32 to vector<16x256xf32>
    %8 = arith.maximumf %6, %7 : vector<16x256xf32>
    %9 = arith.truncf %8 : vector<16x256xf32> to vector<16x256xbf16>
    %c0_6 = arith.constant 0 : index
    %c0_7 = arith.constant 0 : index
    %10 = vector.load %arg4[%c0_6, %c0_7] : memref<256x128xbf16, #tpu.memory_space<vmem>>, vector<256x128xbf16>
    %cst_8 = arith.constant dense<0.000000e+00> : vector<16x128xf32>
    %11 = tpu.matmul %9, %10, %cst_8 {dimension_numbers = #tpu.dot_dimension_numbers<[1], [0], [0], [1], [0, 0, 1, 1], [], []>} : vector<16x256xbf16>, vector<256x128xbf16>, vector<16x128xf32> -> vector<16x128xf32>
    %c0_9 = arith.constant 0 : index
    %c0_10 = arith.constant 0 : index
    %12 = vector.load %arg5[%c0_9, %c0_10] : memref<1x128xf32, #tpu.memory_space<vmem>>, vector<1x128xf32>
    %13 = vector.broadcast %12 : vector<1x128xf32> to vector<16x128xf32>
    %14 = arith.addf %11, %13 : vector<16x128xf32>
    %cst_11 = arith.constant 0.000000e+00 : f32
    %15 = vector.broadcast %cst_11 : f32 to vector<16x128xf32>
    %16 = arith.maximumf %14, %15 : vector<16x128xf32>
    %17 = arith.truncf %16 : vector<16x128xf32> to vector<16x128xbf16>
    %c0_12 = arith.constant 0 : index
    %c0_13 = arith.constant 0 : index
    %18 = vector.load %arg6[%c0_12, %c0_13] : memref<128x128xbf16, #tpu.memory_space<vmem>>, vector<128x128xbf16>
    %cst_14 = arith.constant dense<0.000000e+00> : vector<16x128xf32>
    %19 = tpu.matmul %17, %18, %cst_14 {dimension_numbers = #tpu.dot_dimension_numbers<[1], [0], [0], [1], [0, 0, 1, 1], [], []>} : vector<16x128xbf16>, vector<128x128xbf16>, vector<16x128xf32> -> vector<16x128xf32>
    %c0_15 = arith.constant 0 : index
    %c0_16 = arith.constant 0 : index
    %20 = vector.load %arg7[%c0_15, %c0_16] : memref<1x128xf32, #tpu.memory_space<vmem>>, vector<1x128xf32>
    %21 = vector.broadcast %20 : vector<1x128xf32> to vector<16x128xf32>
    %22 = arith.addf %19, %21 : vector<16x128xf32>
    %cst_17 = arith.constant 0.000000e+00 : f32
    %23 = vector.broadcast %cst_17 : f32 to vector<16x128xf32>
    %24 = arith.maximumf %22, %23 : vector<16x128xf32>
    %25 = arith.truncf %24 : vector<16x128xf32> to vector<16x128xbf16>
    %c0_18 = arith.constant 0 : index
    %c0_19 = arith.constant 0 : index
    %26 = vector.load %arg8[%c0_18, %c0_19] : memref<128x128xbf16, #tpu.memory_space<vmem>>, vector<128x128xbf16>
    %cst_20 = arith.constant dense<0.000000e+00> : vector<16x128xf32>
    %27 = tpu.matmul %25, %26, %cst_20 {dimension_numbers = #tpu.dot_dimension_numbers<[1], [0], [0], [1], [0, 0, 1, 1], [], []>} : vector<16x128xbf16>, vector<128x128xbf16>, vector<16x128xf32> -> vector<16x128xf32>
    %c0_21 = arith.constant 0 : index
    %c0_22 = arith.constant 0 : index
    %28 = vector.load %arg9[%c0_21, %c0_22] : memref<1x128xf32, #tpu.memory_space<vmem>>, vector<1x128xf32>
    %29 = vector.broadcast %28 : vector<1x128xf32> to vector<16x128xf32>
    %30 = arith.addf %27, %29 : vector<16x128xf32>
    %31 = arith.truncf %30 : vector<16x128xf32> to vector<16x128xbf16>
    %c0_23 = arith.constant 0 : index
    %c0_24 = arith.constant 0 : index
    %32 = vector.load %arg10[%c0_23, %c0_24] : memref<16x128xbf16, #tpu.memory_space<vmem>>, vector<16x128xbf16>
    tpu.vector_store %arg10[%c0_23, %c0_24], %31 {strides = array<i32>} : memref<16x128xbf16, #tpu.memory_space<vmem>>, vector<16x128xbf16>,
    return
  }
  func.func @transform_0(%arg0: i32) -> (i32, i32) {
    %c0_i32 = arith.constant 0 : i32
    %c0_i32_0 = arith.constant 0 : i32
    return %arg0, %c0_i32 : i32, i32
  }
  func.func @transform_1(%arg0: i32) -> (i32, i32) {
    %c0_i32 = arith.constant 0 : i32
    %c0_i32_0 = arith.constant 0 : i32
    %c0_i32_1 = arith.constant 0 : i32
    return %c0_i32, %c0_i32_0 : i32, i32
  }
  func.func @transform_2(%arg0: i32) -> (i32, i32) {
    %c0_i32 = arith.constant 0 : i32
    %c0_i32_0 = arith.constant 0 : i32
    %c0_i32_1 = arith.constant 0 : i32
    return %c0_i32, %c0_i32_0 : i32, i32
  }
  func.func @transform_3(%arg0: i32) -> (i32, i32) {
    %c0_i32 = arith.constant 0 : i32
    %c0_i32_0 = arith.constant 0 : i32
    %c0_i32_1 = arith.constant 0 : i32
    return %c0_i32, %c0_i32_0 : i32, i32
  }
  func.func @transform_4(%arg0: i32) -> (i32, i32) {
    %c0_i32 = arith.constant 0 : i32
    %c0_i32_0 = arith.constant 0 : i32
    %c0_i32_1 = arith.constant 0 : i32
    return %c0_i32, %c0_i32_0 : i32, i32
  }
  func.func @transform_5(%arg0: i32) -> (i32, i32) {
    %c0_i32 = arith.constant 0 : i32
    %c0_i32_0 = arith.constant 0 : i32
    %c0_i32_1 = arith.constant 0 : i32
    return %c0_i32, %c0_i32_0 : i32, i32
  }
  func.func @transform_6(%arg0: i32) -> (i32, i32) {
    %c0_i32 = arith.constant 0 : i32
    %c0_i32_0 = arith.constant 0 : i32
    %c0_i32_1 = arith.constant 0 : i32
    return %c0_i32, %c0_i32_0 : i32, i32
  }
  func.func @transform_7(%arg0: i32) -> (i32, i32) {
    %c0_i32 = arith.constant 0 : i32
    %c0_i32_0 = arith.constant 0 : i32
    %c0_i32_1 = arith.constant 0 : i32
    return %c0_i32, %c0_i32_0 : i32, i32
  }
  func.func @transform_8(%arg0: i32) -> (i32, i32) {
    %c0_i32 = arith.constant 0 : i32
    %c0_i32_0 = arith.constant 0 : i32
    %c0_i32_1 = arith.constant 0 : i32
    return %c0_i32, %c0_i32_0 : i32, i32
  }
  func.func @transform_9(%arg0: i32) -> (i32, i32) {
    %c0_i32 = arith.constant 0 : i32
    %c0_i32_0 = arith.constant 0 : i32
    return %arg0, %c0_i32 : i32, i32
  }
}

</mosaic_0001>

<llo_original>
// kernel: tpu_custom_call.1
$region0: #{tpu_custom_call.1}
  #allocation0 [shape = 'u32[]', space=smem, size = 0x4, offset = 0x4, fixed_abs, tag = 'smem constant byte address 0x4 - core index']
  #allocation1 [shape = 'u32[144,128]{1,0:T(1,128)}', space=vmem, size = 0x12000, scoped, tag = 'internal scratch']
  %s0 = inlined_call_operand.hbm [shape: f32[32,64], index: 0, kind: input, shape index: {}]
  %s1 = inlined_call_operand.hbm [shape: bf16[64,256], index: 1, kind: input, shape index: {}]
  %s2 = inlined_call_operand.vmem [shape: f32[1,256], index: 2, kind: input, shape index: {}]
  %s3 = inlined_call_operand.hbm [shape: bf16[256,128], index: 3, kind: input, shape index: {}]
  %s4 = inlined_call_operand.vmem [shape: f32[1,128], index: 4, kind: input, shape index: {}]
  %s5 = inlined_call_operand.hbm [shape: bf16[128,128], index: 5, kind: input, shape index: {}]
  %s6 = inlined_call_operand.vmem [shape: f32[1,128], index: 6, kind: input, shape index: {}]
  %s7 = inlined_call_operand.hbm [shape: bf16[128,128], index: 7, kind: input, shape index: {}]
  %s8 = inlined_call_operand.vmem [shape: f32[1,128], index: 8, kind: input, shape index: {}]
  %s9 = inlined_call_operand.hbm [shape: bf16[32,128], index: 9, kind: output, shape index: {}]
  %s10 = sld [smem:[#allocation0]]
  $region89: #{tpu_custom_call.1} parent=0
    _
  %s12 = ssub.s32 1, %s10
  %s13 = scalar_select 0, %s12, %s10
  $region1: #{tpu_custom_call.1} parent=0
    #allocation2 [shape = 'u8[16384]{0}', space=vmem, size = 0x4000, scoped, tag = 'input window, operand 0']
    #allocation3 [shape = 's32[2]{0}', space=sflag, size = 0x8, scoped, tag = 'scoped memory for tpu_custom_call.1']
    #allocation4 [shape = 's32[2]{0}', space=sflag, size = 0x8, scoped, tag = 'scoped memory for tpu_custom_call.1']
    #allocation5 [shape = 'u8[32768]{0}', space=vmem, size = 0x8000, scoped, tag = 'input window, operand 1, single buffered']
    #allocation6 [shape = 's32[1]{0}', space=sflag, size = 0x4, scoped, tag = 'scoped memory for tpu_custom_call.1']
    #allocation7 [shape = 'u8[65536]{0}', space=vmem, size = 0x10000, scoped, tag = 'input window, operand 3, single buffered']
    #allocation8 [shape = 'u8[32768]{0}', space=vmem, size = 0x8000, scoped, tag = 'input window, operand 5, single buffered']
    #allocation9 [shape = 's32[1]{0}', space=sflag, size = 0x4, scoped, tag = 'scoped memory for tpu_custom_call.1']
    #allocation10 [shape = 'u8[32768]{0}', space=vmem, size = 0x8000, scoped, tag = 'input window, operand 7, single buffered']
    #allocation11 [shape = 'u8[8192]{0}', space=vmem, size = 0x2000, scoped, tag = 'output window, operand 0']
    %14 = vsyncpa [#allocation3], 0
    %s15 = scalar_lea.sflag [#allocation3], 1
    %16 = vsyncpa %s15, 0
    %17 = vsyncpa [#allocation6], 0
    %18 = vsyncpa [#allocation9], 0
    %19 = vsyncpa [#allocation4], 0
    %s20 = scalar_lea.sflag [#allocation4], 1
    %21 = vsyncpa %s20, 0
    loop: start=0, step=1, limit=4
    $region2: #{tpu_custom_call.1} parent=1 // loop_pre_header
      _
    $region3: #{tpu_custom_call.1} parent=1 // loop_header
      %s23 = sphi 0, %s27
      %p24 = scmp.ge.s32.totalorder %s23, 4
      %s33 = sphi 0, %s35
      %s36 = sphi 0, %s33
      %s37 = sphi 0, %s36
      %s53 = sphi 0, %s37
      %s57 = sphi 0, %s57
      %s59 = sphi 0, %s57
      %s60 = sphi 0, %s59
      %s74 = sphi 0, %s60
      %s78 = sphi 0, %s78
      %s80 = sphi 0, %s78
      %s81 = sphi 0, %s80
      %s95 = sphi 0, %s81
      %s99 = sphi 0, %s99
      %s101 = sphi 0, %s99
      %s102 = sphi 0, %s101
      %s116 = sphi 0, %s102
      %s120 = sphi 0, %s120
      %s122 = sphi 0, %s120
      %s123 = sphi 0, %s122
      %s137 = sphi 0, %s123
      %s141 = sphi 0, %s141
      %s143 = sphi 0, %s141
      %s144 = sphi 0, %s143
      %s158 = sphi 0, %s144
      %s162 = sphi 0, %s162
      %s164 = sphi 0, %s162
      %s165 = sphi 0, %s164
      %s179 = sphi 0, %s165
      %s183 = sphi 0, %s183
      %s185 = sphi 0, %s183
      %s186 = sphi 0, %s185
      %s200 = sphi 0, %s186
      %s204 = sphi 0, %s204
      %s206 = sphi 0, %s204
      %s207 = sphi 0, %s206
      %s221 = sphi 0, %s207
      %s227 = sphi 0, %s229
      %s230 = sphi 0, %s227
      %s231 = sphi 0, %s230
      %s247 = sphi 0, %s231
    $region4: #{tpu_custom_call.1} parent=1 // loop_header_branch
      %26 = sbr.rel (%p24) target = $region8
    $region5: #{tpu_custom_call.1} parent=1 // loop_body
      %s28 = ssub.s32 %s23, 1
      %s29 = ssub.s32 %s23, 2
      %s30 = sadd.s32 %s23, 1
      %s31 = ssub.s32 %s23, %s30
      %p32 = scmp.eq.s32.totalorder %s31, 0
      %s34 = sadd.s32 %s33, 1
      %s35 = scalar_select %p32, %s33, %s34
      %p38 = pneg %p32
      %p39 = scmp.eq.s32.totalorder %s23, 1
      %p40 = por %p38, %p39
      %p41 = scmp.ne.s32.totalorder %s33, %s36
      %p42 = scmp.eq.s32.totalorder %s23, 0
      %p43 = por %p41, %p42
      %p44 = scmp.ne.s32.totalorder %s33, %s36
      %p45 = scmp.eq.s32.totalorder %s28, 1
      %p46 = por %p44, %p45
      %p47 = scmp.ne.s32.totalorder %s36, %s37
      %p48 = scmp.eq.s32.totalorder %s28, 0
      %p49 = por %p47, %p48
      %p50 = scmp.ne.s32.totalorder %s36, %s37
      %p51 = scmp.eq.s32.totalorder %s29, 1
      %p52 = por %p50, %p51
      %p54 = scmp.ne.s32.totalorder %s37, %s53
      %p55 = scmp.eq.s32.totalorder %s29, 0
      %p56 = por %p54, %p55
      %s58 = sadd.s32 %s57, 1
      %p61 = scmp.eq.s32.totalorder %s23, 1
      %p62 = scmp.ne.s32.totalorder %s57, %s59
      %p63 = scmp.eq.s32.totalorder %s23, 0
      %p64 = por %p62, %p63
      %p65 = scmp.ne.s32.totalorder %s57, %s59
      %p66 = scmp.eq.s32.totalorder %s28, 1
      %p67 = por %p65, %p66
      %p68 = scmp.ne.s32.totalorder %s59, %s60
      %p69 = scmp.eq.s32.totalorder %s28, 0
      %p70 = por %p68, %p69
      %p71 = scmp.ne.s32.totalorder %s59, %s60
      %p72 = scmp.eq.s32.totalorder %s29, 1
      %p73 = por %p71, %p72
      %p75 = scmp.ne.s32.totalorder %s60, %s74
      %p76 = scmp.eq.s32.totalorder %s29, 0
      %p77 = por %p75, %p76
      %s79 = sadd.s32 %s78, 1
      %p82 = scmp.eq.s32.totalorder %s23, 1
      %p83 = scmp.ne.s32.totalorder %s78, %s80
      %p84 = scmp.eq.s32.totalorder %s23, 0
      %p85 = por %p83, %p84
      %p86 = scmp.ne.s32.totalorder %s78, %s80
      %p87 = scmp.eq.s32.totalorder %s28, 1
      %p88 = por %p86, %p87
      %p89 = scmp.ne.s32.totalorder %s80, %s81
      %p90 = scmp.eq.s32.totalorder %s28, 0
      %p91 = por %p89, %p90
      %p92 = scmp.ne.s32.totalorder %s80, %s81
      %p93 = scmp.eq.s32.totalorder %s29, 1
      %p94 = por %p92, %p93
      %p96 = scmp.ne.s32.totalorder %s81, %s95
      %p97 = scmp.eq.s32.totalorder %s29, 0
      %p98 = por %p96, %p97
      %s100 = sadd.s32 %s99, 1
      %p103 = scmp.eq.s32.totalorder %s23, 1
      %p104 = scmp.ne.s32.totalorder %s99, %s101
      %p105 = scmp.eq.s32.totalorder %s23, 0
      %p106 = por %p104, %p105
      %p107 = scmp.ne.s32.totalorder %s99, %s101
      %p108 = scmp.eq.s32.totalorder %s28, 1
      %p109 = por %p107, %p108
      %p110 = scmp.ne.s32.totalorder %s101, %s102
      %p111 = scmp.eq.s32.totalorder %s28, 0
      %p112 = por %p110, %p111
      %p113 = scmp.ne.s32.totalorder %s101, %s102
      %p114 = scmp.eq.s32.totalorder %s29, 1
      %p115 = por %p113, %p114
      %p117 = scmp.ne.s32.totalorder %s102, %s116
      %p118 = scmp.eq.s32.totalorder %s29, 0
      %p119 = por %p117, %p118
      %s121 = sadd.s32 %s120, 1
      %p124 = scmp.eq.s32.totalorder %s23, 1
      %p125 = scmp.ne.s32.totalorder %s120, %s122
      %p126 = scmp.eq.s32.totalorder %s23, 0
      %p127 = por %p125, %p126
      %p128 = scmp.ne.s32.totalorder %s120, %s122
      %p129 = scmp.eq.s32.totalorder %s28, 1
      %p130 = por %p128, %p129
      %p131 = scmp.ne.s32.totalorder %s122, %s123
      %p132 = scmp.eq.s32.totalorder %s28, 0
      %p133 = por %p131, %p132
      %p134 = scmp.ne.s32.totalorder %s122, %s123
      %p135 = scmp.eq.s32.totalorder %s29, 1
      %p136 = por %p134, %p135
      %p138 = scmp.ne.s32.totalorder %s123, %s137
      %p139 = scmp.eq.s32.totalorder %s29, 0
      %p140 = por %p138, %p139
      %s142 = sadd.s32 %s141, 1
      %p145 = scmp.eq.s32.totalorder %s23, 1
      %p146 = scmp.ne.s32.totalorder %s141, %s143
      %p147 = scmp.eq.s32.totalorder %s23, 0
      %p148 = por %p146, %p147
      %p149 = scmp.ne.s32.totalorder %s141, %s143
      %p150 = scmp.eq.s32.totalorder %s28, 1
      %p151 = por %p149, %p150
      %p152 = scmp.ne.s32.totalorder %s143, %s144
      %p153 = scmp.eq.s32.totalorder %s28, 0
      %p154 = por %p152, %p153
      %p155 = scmp.ne.s32.totalorder %s143, %s144
      %p156 = scmp.eq.s32.totalorder %s29, 1
      %p157 = por %p155, %p156
      %p159 = scmp.ne.s32.totalorder %s144, %s158
      %p160 = scmp.eq.s32.totalorder %s29, 0
      %p161 = por %p159, %p160
      %s163 = sadd.s32 %s162, 1
      %p166 = scmp.eq.s32.totalorder %s23, 1
      %p167 = scmp.ne.s32.totalorder %s162, %s164
      %p168 = scmp.eq.s32.totalorder %s23, 0
      %p169 = por %p167, %p168
      %p170 = scmp.ne.s32.totalorder %s162, %s164
      %p171 = scmp.eq.s32.totalorder %s28, 1
      %p172 = por %p170, %p171
      %p173 = scmp.ne.s32.totalorder %s164, %s165
      %p174 = scmp.eq.s32.totalorder %s28, 0
      %p175 = por %p173, %p174
      %p176 = scmp.ne.s32.totalorder %s164, %s165
      %p177 = scmp.eq.s32.totalorder %s29, 1
      %p178 = por %p176, %p177
      %p180 = scmp.ne.s32.totalorder %s165, %s179
      %p181 = scmp.eq.s32.totalorder %s29, 0
      %p182 = por %p180, %p181
      %s184 = sadd.s32 %s183, 1
      %p187 = scmp.eq.s32.totalorder %s23, 1
      %p188 = scmp.ne.s32.totalorder %s183, %s185
      %p189 = scmp.eq.s32.totalorder %s23, 0
      %p190 = por %p188, %p189
      %p191 = scmp.ne.s32.totalorder %s183, %s185
      %p192 = scmp.eq.s32.totalorder %s28, 1
      %p193 = por %p191, %p192
      %p194 = scmp.ne.s32.totalorder %s185, %s186
      %p195 = scmp.eq.s32.totalorder %s28, 0
      %p196 = por %p194, %p195
      %p197 = scmp.ne.s32.totalorder %s185, %s186
      %p198 = scmp.eq.s32.totalorder %s29, 1
      %p199 = por %p197, %p198
      %p201 = scmp.ne.s32.totalorder %s186, %s200
      %p202 = scmp.eq.s32.totalorder %s29, 0
      %p203 = por %p201, %p202
      %s205 = sadd.s32 %s204, 1
      %p208 = scmp.eq.s32.totalorder %s23, 1
      %p209 = scmp.ne.s32.totalorder %s204, %s206
      %p210 = scmp.eq.s32.totalorder %s23, 0
      %p211 = por %p209, %p210
      %p212 = scmp.ne.s32.totalorder %s204, %s206
      %p213 = scmp.eq.s32.totalorder %s28, 1
      %p214 = por %p212, %p213
      %p215 = scmp.ne.s32.totalorder %s206, %s207
      %p216 = scmp.eq.s32.totalorder %s28, 0
      %p217 = por %p215, %p216
      %p218 = scmp.ne.s32.totalorder %s206, %s207
      %p219 = scmp.eq.s32.totalorder %s29, 1
      %p220 = por %p218, %p219
      %p222 = scmp.ne.s32.totalorder %s207, %s221
      %p223 = scmp.eq.s32.totalorder %s29, 0
      %p224 = por %p222, %p223
      %s225 = ssub.s32 %s23, %s30
      %p226 = scmp.eq.s32.totalorder %s225, 0
      %s228 = sadd.s32 %s227, 1
      %s229 = scalar_select %p226, %s227, %s228
      %p232 = pneg %p226
      %p233 = scmp.eq.s32.totalorder %s23, 1
      %p234 = por %p232, %p233
      %p235 = scmp.ne.s32.totalorder %s227, %s230
      %p236 = scmp.eq.s32.totalorder %s23, 0
      %p237 = por %p235, %p236
      %p238 = scmp.ne.s32.totalorder %s227, %s230
      %p239 = scmp.eq.s32.totalorder %s28, 1
      %p240 = por %p238, %p239
      %p241 = scmp.ne.s32.totalorder %s230, %s231
      %p242 = scmp.eq.s32.totalorder %s28, 0
      %p243 = por %p241, %p242
      %p244 = scmp.ne.s32.totalorder %s230, %s231
      %p245 = scmp.eq.s32.totalorder %s29, 1
      %p246 = por %p244, %p245
      %p248 = scmp.ne.s32.totalorder %s231, %s247
      %p249 = scmp.eq.s32.totalorder %s29, 0
      %p250 = por %p248, %p249
      %p251 = scmp.le.s32.totalorder 1, %s23
      %p252 = scmp.lt.s32.totalorder %s23, 3
      %p253 = pnand %p251, %p252
      %p254 = pneg %p253
      // Predicated region
      $region9: #{tpu_custom_call.1} parent=5 // pred_check
        _
      $region10: #{tpu_custom_call.1} parent=5 // pred_check_branch
        %256 = sbr.rel (%p253) target = $region12
      $region11: #{tpu_custom_call.1} parent=5 // pred_region
        %s257 = ssub.s32 %s23, 1
        // Predicated region
        $region13: #{tpu_custom_call.1} parent=11 // pred_check
          %p258 = pneg %p70
        $region14: #{tpu_custom_call.1} parent=11 // pred_check_branch
          %260 = sbr.rel (%p258) target = $region16
        $region15: #{tpu_custom_call.1} parent=11 // pred_region
          %s262 = ssub.s32 1024, 1024
          %263 = vsyncadd [#allocation6], %s262
          %s264 = sshll.u32 [#allocation5], 4
          %s265 = int_to_ptr.vmem [resolvable:$true] %s264
          %270 = dma.hbm_to_vmem [thread:$0]  %s1, 1024, %s265, [#allocation6], 128, 128, 8
        $region16: #{tpu_custom_call.1} parent=11 // pred_fallthru
          _
        // Predicated region
        $region17: #{tpu_custom_call.1} parent=11 // pred_check
          %p271 = pneg %p91
        $region18: #{tpu_custom_call.1} parent=11 // pred_check_branch
          %273 = sbr.rel (%p271) target = $region20
        $region19: #{tpu_custom_call.1} parent=11 // pred_region
          _
        $region20: #{tpu_custom_call.1} parent=11 // pred_fallthru
          _
        // Predicated region
        $region21: #{tpu_custom_call.1} parent=11 // pred_check
          %p274 = pneg %p112
        $region22: #{tpu_custom_call.1} parent=11 // pred_check_branch
          %276 = sbr.rel (%p274) target = $region24
        $region23: #{tpu_custom_call.1} parent=11 // pred_region
          %s278 = ssub.s32 2048, 2048
          %279 = vsyncadd [#allocation6], %s278
          %s280 = sshll.u32 [#allocation7], 4
          %s281 = int_to_ptr.vmem [resolvable:$true] %s280
          %286 = dma.hbm_to_vmem [thread:$0]  %s3, 2048, %s281, [#allocation6], 64, 64, 4
        $region24: #{tpu_custom_call.1} parent=11 // pred_fallthru
          _
        // Predicated region
        $region25: #{tpu_custom_call.1} parent=11 // pred_check
          %p287 = pneg %p133
        $region26: #{tpu_custom_call.1} parent=11 // pred_check_branch
          %289 = sbr.rel (%p287) target = $region28
        $region27: #{tpu_custom_call.1} parent=11 // pred_region
          _
        $region28: #{tpu_custom_call.1} parent=11 // pred_fallthru
          _
        // Predicated region
        $region29: #{tpu_custom_call.1} parent=11 // pred_check
          %p290 = pneg %p154
        $region30: #{tpu_custom_call.1} parent=11 // pred_check_branch
          %292 = sbr.rel (%p290) target = $region32
        $region31: #{tpu_custom_call.1} parent=11 // pred_region
          %s294 = ssub.s32 1024, 1024
          %295 = vsyncadd [#allocation9], %s294
          %s296 = sshll.u32 [#allocation8], 4
          %s297 = int_to_ptr.vmem [resolvable:$true] %s296
          %302 = dma.hbm_to_vmem [thread:$0]  %s5, 1024, %s297, [#allocation9], 64, 64, 4
        $region32: #{tpu_custom_call.1} parent=11 // pred_fallthru
          _
        // Predicated region
        $region33: #{tpu_custom_call.1} parent=11 // pred_check
          %p303 = pneg %p175
        $region34: #{tpu_custom_call.1} parent=11 // pred_check_branch
          %305 = sbr.rel (%p303) target = $region36
        $region35: #{tpu_custom_call.1} parent=11 // pred_region
          _
        $region36: #{tpu_custom_call.1} parent=11 // pred_fallthru
          _
        // Predicated region
        $region37: #{tpu_custom_call.1} parent=11 // pred_check
          %p306 = pneg %p196
        $region38: #{tpu_custom_call.1} parent=11 // pred_check_branch
          %308 = sbr.rel (%p306) target = $region40
        $region39: #{tpu_custom_call.1} parent=11 // pred_region
          %s310 = ssub.s32 1024, 1024
          %311 = vsyncadd [#allocation9], %s310
          %s312 = sshll.u32 [#allocation10], 4
          %s313 = int_to_ptr.vmem [resolvable:$true] %s312
          %318 = dma.hbm_to_vmem [thread:$0]  %s7, 1024, %s313, [#allocation9], 64, 64, 4
        $region40: #{tpu_custom_call.1} parent=11 // pred_fallthru
          _
        // Predicated region
        $region41: #{tpu_custom_call.1} parent=11 // pred_check
          %p319 = pneg %p217
        $region42: #{tpu_custom_call.1} parent=11 // pred_check_branch
          %321 = sbr.rel (%p319) target = $region44
        $region43: #{tpu_custom_call.1} parent=11 // pred_region
          _
        $region44: #{tpu_custom_call.1} parent=11 // pred_fallthru
          _
      $region12: #{tpu_custom_call.1} parent=5 // pred_fallthru
        _
      %p322 = scmp.lt.s32.totalorder %s23, 2
      // Predicated region
      $region45: #{tpu_custom_call.1} parent=5 // pred_check
        %p323 = pneg %p322
      $region46: #{tpu_custom_call.1} parent=5 // pred_check_branch
        %325 = sbr.rel (%p323) target = $region48
      $region47: #{tpu_custom_call.1} parent=5 // pred_region
        // Predicated region
        $region49: #{tpu_custom_call.1} parent=47 // pred_check
          %p326 = pneg %p43
        $region50: #{tpu_custom_call.1} parent=47 // pred_check_branch
          %328 = sbr.rel (%p326) target = $region52
        $region51: #{tpu_custom_call.1} parent=47 // pred_region
          %s329 = sand.u32 %s33, 1
          %s330 = scalar_lea.sflag [#allocation3], %s329
          %s331 = sand.u32 %s33, 1
          %s332 = smul.addr %s331, 16
          %s333 = scalar_lea.vmem [#allocation2], %s332
          %s334 = smul.u32 2, %s23
          %s336 = ssub.s32 256, 256
          %337 = vsyncadd %s330, %s336
          %s338 = smul.addr %s334, 128
          %s339 = scalar_lea.hbm %s0, %s338
          %s340 = sshll.u32 %s333, 4
          %s341 = int_to_ptr.vmem [resolvable:$true] %s340
          %346 = dma.hbm_to_vmem [thread:$0]  %s339, 256, %s341, %s330, 128, 128, 8
        $region52: #{tpu_custom_call.1} parent=47 // pred_fallthru
          _
      $region48: #{tpu_custom_call.1} parent=5 // pred_fallthru
        _
      %p347 = scmp.le.s32.totalorder 1, %s23
      %p348 = scmp.lt.s32.totalorder %s23, 3
      %p349 = pnand %p347, %p348
      %p350 = pneg %p349
      // Predicated region
      $region53: #{tpu_custom_call.1} parent=5 // pred_check
        _
      $region54: #{tpu_custom_call.1} parent=5 // pred_check_branch
        %352 = sbr.rel (%p349) target = $region56
      $region55: #{tpu_custom_call.1} parent=5 // pred_region
        %s353 = ssub.s32 %s23, 1
        %s354 = sand.u32 %s36, 1
        %s355 = scalar_lea.sflag [#allocation3], %s354
        %s356 = sand.u32 %s36, 1
        %s357 = smul.addr %s356, 16
        %s358 = scalar_lea.vmem [#allocation2], %s357
        // Predicated region
        $region57: #{tpu_custom_call.1} parent=55 // pred_check
          %p359 = pneg %p49
        $region58: #{tpu_custom_call.1} parent=55 // pred_check_branch
          %361 = sbr.rel (%p359) target = $region60
        $region59: #{tpu_custom_call.1} parent=55 // pred_region
          %362 = dma.done %s355, 256
        $region60: #{tpu_custom_call.1} parent=55 // pred_fallthru
          _
        // Predicated region
        $region61: #{tpu_custom_call.1} parent=55 // pred_check
          %p363 = pneg %p70
        $region62: #{tpu_custom_call.1} parent=55 // pred_check_branch
          %365 = sbr.rel (%p363) target = $region64
        $region63: #{tpu_custom_call.1} parent=55 // pred_region
          %366 = dma.done [#allocation6], 1024
        $region64: #{tpu_custom_call.1} parent=55 // pred_fallthru
          _
        // Predicated region
        $region65: #{tpu_custom_call.1} parent=55 // pred_check
          %p367 = pneg %p112
        $region66: #{tpu_custom_call.1} parent=55 // pred_check_branch
          %369 = sbr.rel (%p367) target = $region68
        $region67: #{tpu_custom_call.1} parent=55 // pred_region
          %370 = dma.done [#allocation6], 2048
        $region68: #{tpu_custom_call.1} parent=55 // pred_fallthru
          _
        // Predicated region
        $region69: #{tpu_custom_call.1} parent=55 // pred_check
          %p371 = pneg %p154
        $region70: #{tpu_custom_call.1} parent=55 // pred_check_branch
          %373 = sbr.rel (%p371) target = $region72
        $region71: #{tpu_custom_call.1} parent=55 // pred_region
          %374 = dma.done [#allocation9], 1024
        $region72: #{tpu_custom_call.1} parent=55 // pred_fallthru
          _
        // Predicated region
        $region73: #{tpu_custom_call.1} parent=55 // pred_check
          %p375 = pneg %p196
        $region74: #{tpu_custom_call.1} parent=55 // pred_check_branch
          %377 = sbr.rel (%p375) target = $region76
        $region75: #{tpu_custom_call.1} parent=55 // pred_region
          %378 = dma.done [#allocation9], 1024
        $region76: #{tpu_custom_call.1} parent=55 // pred_fallthru
          _
        %s379 = sand.u32 %s36, 1
        %s380 = scalar_lea.sflag [#allocation3], %s379
        %s381 = sand.u32 %s36, 1
        %s382 = smul.addr %s381, 16
        %s383 = scalar_lea.vmem [#allocation2], %s382
        %p384 = pneg %p49
        %p385 = pneg %p46
        %p386 = pneg %p70
        %p387 = pneg %p67
        %p388 = pneg %p91
        %p389 = pneg %p88
        %p390 = pneg %p112
        %p391 = pneg %p109
        %p392 = pneg %p133
        %p393 = pneg %p130
        %p394 = pneg %p154
        %p395 = pneg %p151
        %p396 = pneg %p175
        %p397 = pneg %p172
        %p398 = pneg %p196
        %p399 = pneg %p193
        %p400 = pneg %p217
        %p401 = pneg %p214
        %p402 = pneg %p243
        %p403 = pneg %p240
        %s404 = sand.u32 %s230, 1
        %s405 = scalar_lea.sflag [#allocation4], %s404
        %s406 = sand.u32 %s230, 1
        %s407 = smul.addr %s406, 8
        %s408 = scalar_lea.vmem [#allocation11], %s407
        %s409 = smul.u32 2, %s28
        %s410 = smul.u32 2, %s28
        %v412 = vld [vmem:[%s358] sm:$0xff]
        %v413 = vld [vmem:[%s358 + $0x8] sm:$0xff]
        %v414 = vpack.c.bf16 %v413, %v412
        %v415 = vld [vmem:[#allocation5] sm:$0xff]
        %v416 = vld [vmem:[#allocation5 + $0x8] sm:$0xff]
        %v417 = vld [vmem:[#allocation5 + $0x10] sm:$0xff]
        %v418 = vld [vmem:[#allocation5 + $0x18] sm:$0xff]
        %v419 = vld [vmem:[#allocation5 + $0x20] sm:$0xff]
        %v420 = vld [vmem:[#allocation5 + $0x28] sm:$0xff]
        %v421 = vld [vmem:[#allocation5 + $0x30] sm:$0xff]
        %v422 = vld [vmem:[#allocation5 + $0x38] sm:$0xff]
        %v423 = vld [vmem:[%s2] sm:$0x3]
        %v425 = vlaneseq
        %v426 = vshrl.u32 %v425, 7
        %v427 = vsub.s32 0, %v426
        %v428 = vrot.slane %v423, %v427
        %v429 = vlaneseq
        %v430 = vshrl.u32 %v429, 7
        %v431 = vsub.s32 1, %v430
        %v432 = vrot.slane %v423, %v431
        %v443 = vunpack.c.l.b16 %v415
        %v444 = vunpack.c.h.b16 %v415
        %v445 = vunpack.c.l.b16 %v416
        %v446 = vunpack.c.h.b16 %v416
        %v447 = vunpack.c.l.b16 %v417
        %v448 = vunpack.c.h.b16 %v417
        %v449 = vunpack.c.l.b16 %v418
        %v450 = vunpack.c.h.b16 %v418
        %v451 = vunpack.c.l.b16 %v419
        %v452 = vunpack.c.h.b16 %v419
        %v453 = vunpack.c.l.b16 %v420
        %v454 = vunpack.c.h.b16 %v420
        %v455 = vunpack.c.l.b16 %v421
        %v456 = vunpack.c.h.b16 %v421
        %v457 = vunpack.c.l.b16 %v422
        %v458 = vunpack.c.h.b16 %v422
        %v459 = vpack.c.b16 %v445, %v443
        %v460 = vpack.c.b16 %v446, %v444
        %v461 = vpack.c.b16 %v449, %v447
        %v462 = vpack.c.b16 %v450, %v448
        %v463 = vpack.c.b16 %v453, %v451
        %v464 = vpack.c.b16 %v454, %v452
        %v465 = vpack.c.b16 %v457, %v455
        %v466 = vpack.c.b16 %v458, %v456
        %vm475 = vcmask 523264
        %v477 = vsel %vm475, %v414, 0
        %479 = vmatprep.subr.bf16.mxu0 %v460
        %480 = vmatpush1.bf16.msra.mxu0 %v459
        %481 = vmatprep.subr.bf16.mxu0 %v462
        %482 = vmatpush1.bf16.msra.mxu0 %v461
        %483 = vmatprep.subr.bf16.mxu0 %v464
        %484 = vmatpush1.bf16.msra.mxu0 %v463
        %485 = vmatprep.subr.bf16.mxu0 %v466
        %486 = vmatpush1.bf16.msra.mxu0 %v465
        %487 = vmatprep.subr.bf16.mxu0 0
        %488 = vmatpush1.bf16.msra.mxu0 0
        %489 = vmatprep.subr.bf16.mxu0 0
        %490 = vmatpush1.bf16.msra.mxu0 0
        %491 = vmatprep.subr.bf16.mxu0 0
        %492 = vmatpush1.bf16.msra.mxu0 0
        %493 = vmatprep.subr.bf16.mxu0 0
        %494 = vmatpush1.bf16.msra.mxu0 0
        %495 = vmatprep.subr.bf16.mxu0 0
        %496 = vmatpush1.bf16.msra.mxu0 0
        %497 = vmatprep.subr.bf16.mxu0 0
        %498 = vmatpush1.bf16.msra.mxu0 0
        %499 = vmatprep.subr.bf16.mxu0 0
        %500 = vmatpush1.bf16.msra.mxu0 0
        %501 = vmatprep.subr.bf16.mxu0 0
        %502 = vmatpush1.bf16.msra.mxu0 0
        %503 = vmatprep.subr.bf16.mxu0 0
        %504 = vmatpush1.bf16.msra.mxu0 0
        %505 = vmatprep.subr.bf16.mxu0 0
        %506 = vmatpush1.bf16.msra.mxu0 0
        %507 = vmatprep.subr.bf16.mxu0 0
        %508 = vmatpush1.bf16.msra.mxu0 0
        %509 = vmatprep.subr.bf16.mxu0 0
        %510 = vmatpush1.bf16.msra.mxu0 0
        %511 = vmatprep.mubr.bf16.mxu0 0
        %512 = vmatmul.mubr.bf16.gmra.mrb[0].mxu0 %v477
        %v513 = vpop.f32.mrb[0].mxu0
        %v514 = vadd.f32 %v428, %v513
        %v515 = vpop.f32.mrb[0].mxu0
        %v516 = vadd.f32 %v432, %v515
        %v517 = vpop.f32.mrb[0].mxu0
        %v518 = vadd.f32 %v428, %v517
        %v519 = vpop.f32.mrb[0].mxu0
        %v520 = vadd.f32 %v432, %v519
        %521 = vdwg.mxu0
        %v522 = vmax.f32 %v514, 0.0
        %v523 = vmax.f32 %v516, 0.0
        %v524 = vmax.f32 %v518, 0.0
        %v525 = vmax.f32 %v520, 0.0
        %v526 = vpack.c.bf16 %v524, %v522
        %v527 = vpack.c.bf16 %v525, %v523
        %v528 = vld [vmem:[#allocation7] sm:$0xf]
        %v529 = vld [vmem:[#allocation7 + $0x4] sm:$0xf]
        %v530 = vld [vmem:[#allocation7 + $0x8] sm:$0xf]
        %v531 = vld [vmem:[#allocation7 + $0xc] sm:$0xf]
        %v532 = vld [vmem:[#allocation7 + $0x10] sm:$0xf]
        %v533 = vld [vmem:[#allocation7 + $0x14] sm:$0xf]
        %v534 = vld [vmem:[#allocation7 + $0x18] sm:$0xf]
        %v535 = vld [vmem:[#allocation7 + $0x1c] sm:$0xf]
        %v536 = vld [vmem:[#allocation7 + $0x20] sm:$0xf]
        %v537 = vld [vmem:[#allocation7 + $0x24] sm:$0xf]
        %v538 = vld [vmem:[#allocation7 + $0x28] sm:$0xf]
        %v539 = vld [vmem:[#allocation7 + $0x2c] sm:$0xf]
        %v540 = vld [vmem:[#allocation7 + $0x30] sm:$0xf]
        %v541 = vld [vmem:[#allocation7 + $0x34] sm:$0xf]
        %v542 = vld [vmem:[#allocation7 + $0x38] sm:$0xf]
        %v543 = vld [vmem:[#allocation7 + $0x3c] sm:$0xf]
        %v544 = vld [vmem:[#allocation7 + $0x40] sm:$0xf]
        %v545 = vld [vmem:[#allocation7 + $0x44] sm:$0xf]
        %v546 = vld [vmem:[#allocation7 + $0x48] sm:$0xf]
        %v547 = vld [vmem:[#allocation7 + $0x4c] sm:$0xf]
        %v548 = vld [vmem:[#allocation7 + $0x50] sm:$0xf]
        %v549 = vld [vmem:[#allocation7 + $0x54] sm:$0xf]
        %v550 = vld [vmem:[#allocation7 + $0x58] sm:$0xf]
        %v551 = vld [vmem:[#allocation7 + $0x5c] sm:$0xf]
        %v552 = vld [vmem:[#allocation7 + $0x60] sm:$0xf]
        %v553 = vld [vmem:[#allocation7 + $0x64] sm:$0xf]
        %v554 = vld [vmem:[#allocation7 + $0x68] sm:$0xf]
        %v555 = vld [vmem:[#allocation7 + $0x6c] sm:$0xf]
        %v556 = vld [vmem:[#allocation7 + $0x70] sm:$0xf]
        %v557 = vld [vmem:[#allocation7 + $0x74] sm:$0xf]
        %v558 = vld [vmem:[#allocation7 + $0x78] sm:$0xf]
        %v559 = vld [vmem:[#allocation7 + $0x7c] sm:$0xf]
        %v560 = vld [vmem:[%s4] sm:$0x1]
        %v562 = vlaneseq
        %v563 = vshrl.u32 %v562, 7
        %v564 = vsub.s32 0, %v563
        %v565 = vrot.slane %v560, %v564
        %v599 = vunpack.c.l.b16 %v528
        %v600 = vunpack.c.l.b16 %v529
        %v601 = vunpack.c.l.b16 %v530
        %v602 = vunpack.c.l.b16 %v531
        %v603 = vunpack.c.l.b16 %v532
        %v604 = vunpack.c.l.b16 %v533
        %v605 = vunpack.c.l.b16 %v534
        %v606 = vunpack.c.l.b16 %v535
        %v607 = vunpack.c.l.b16 %v536
        %v608 = vunpack.c.l.b16 %v537
        %v609 = vunpack.c.l.b16 %v538
        %v610 = vunpack.c.l.b16 %v539
        %v611 = vunpack.c.l.b16 %v540
        %v612 = vunpack.c.l.b16 %v541
        %v613 = vunpack.c.l.b16 %v542
        %v614 = vunpack.c.l.b16 %v543
        %v615 = vunpack.c.l.b16 %v544
        %v616 = vunpack.c.l.b16 %v545
        %v617 = vunpack.c.l.b16 %v546
        %v618 = vunpack.c.l.b16 %v547
        %v619 = vunpack.c.l.b16 %v548
        %v620 = vunpack.c.l.b16 %v549
        %v621 = vunpack.c.l.b16 %v550
        %v622 = vunpack.c.l.b16 %v551
        %v623 = vunpack.c.l.b16 %v552
        %v624 = vunpack.c.l.b16 %v553
        %v625 = vunpack.c.l.b16 %v554
        %v626 = vunpack.c.l.b16 %v555
        %v627 = vunpack.c.l.b16 %v556
        %v628 = vunpack.c.l.b16 %v557
        %v629 = vunpack.c.l.b16 %v558
        %v630 = vunpack.c.l.b16 %v559
        %v631 = vpack.c.b16 %v600, %v599
        %v632 = vpack.c.b16 %v602, %v601
        %v633 = vpack.c.b16 %v604, %v603
        %v634 = vpack.c.b16 %v606, %v605
        %v635 = vpack.c.b16 %v608, %v607
        %v636 = vpack.c.b16 %v610, %v609
        %v637 = vpack.c.b16 %v612, %v611
        %v638 = vpack.c.b16 %v614, %v613
        %v639 = vpack.c.b16 %v616, %v615
        %v640 = vpack.c.b16 %v618, %v617
        %v641 = vpack.c.b16 %v620, %v619
        %v642 = vpack.c.b16 %v622, %v621
        %v643 = vpack.c.b16 %v624, %v623
        %v644 = vpack.c.b16 %v626, %v625
        %v645 = vpack.c.b16 %v628, %v627
        %v646 = vpack.c.b16 %v630, %v629
        %663 = vmatprep.subr.bf16.mxu0 0
        %664 = vmatpush1.bf16.msra.mxu0 %v631
        %665 = vmatprep.subr.bf16.mxu0 0
        %666 = vmatpush1.bf16.msra.mxu0 %v632
        %667 = vmatprep.subr.bf16.mxu0 0
        %668 = vmatpush1.bf16.msra.mxu0 %v633
        %669 = vmatprep.subr.bf16.mxu0 0
        %670 = vmatpush1.bf16.msra.mxu0 %v634
        %671 = vmatprep.subr.bf16.mxu0 0
        %672 = vmatpush1.bf16.msra.mxu0 %v635
        %673 = vmatprep.subr.bf16.mxu0 0
        %674 = vmatpush1.bf16.msra.mxu0 %v636
        %675 = vmatprep.subr.bf16.mxu0 0
        %676 = vmatpush1.bf16.msra.mxu0 %v637
        %677 = vmatprep.subr.bf16.mxu0 0
        %678 = vmatpush1.bf16.msra.mxu0 %v638
        %679 = vmatprep.subr.bf16.mxu0 0
        %680 = vmatpush1.bf16.msra.mxu0 %v639
        %681 = vmatprep.subr.bf16.mxu0 0
        %682 = vmatpush1.bf16.msra.mxu0 %v640
        %683 = vmatprep.subr.bf16.mxu0 0
        %684 = vmatpush1.bf16.msra.mxu0 %v641
        %685 = vmatprep.subr.bf16.mxu0 0
        %686 = vmatpush1.bf16.msra.mxu0 %v642
        %687 = vmatprep.subr.bf16.mxu0 0
        %688 = vmatpush1.bf16.msra.mxu0 %v643
        %689 = vmatprep.subr.bf16.mxu0 0
        %690 = vmatpush1.bf16.msra.mxu0 %v644
        %691 = vmatprep.subr.bf16.mxu0 0
        %692 = vmatpush1.bf16.msra.mxu0 %v645
        %693 = vmatprep.subr.bf16.mxu0 0
        %694 = vmatpush1.bf16.msra.mxu0 %v646
        %695 = vmatprep.mubr.bf16.mxu0 %v527
        %696 = vmatmul.mubr.bf16.gmra.mrb[0].mxu0 %v526
        %v697 = vpop.f32.mrb[0].mxu0
        %v698 = vadd.f32 %v565, %v697
        %v699 = vpop.f32.mrb[0].mxu0
        %v700 = vpop.f32.mrb[0].mxu0
        %v701 = vadd.f32 %v565, %v700
        %v702 = vpop.f32.mrb[0].mxu0
        %703 = vdwg.mxu0
        %v704 = vmax.f32 %v698, 0.0
        %v705 = vmax.f32 %v701, 0.0
        %v706 = vpack.c.bf16 %v705, %v704
        %v707 = vld [vmem:[#allocation8] sm:$0xf]
        %v708 = vld [vmem:[#allocation8 + $0x4] sm:$0xf]
        %v709 = vld [vmem:[#allocation8 + $0x8] sm:$0xf]
        %v710 = vld [vmem:[#allocation8 + $0xc] sm:$0xf]
        %v711 = vld [vmem:[#allocation8 + $0x10] sm:$0xf]
        %v712 = vld [vmem:[#allocation8 + $0x14] sm:$0xf]
        %v713 = vld [vmem:[#allocation8 + $0x18] sm:$0xf]
        %v714 = vld [vmem:[#allocation8 + $0x1c] sm:$0xf]
        %v715 = vld [vmem:[#allocation8 + $0x20] sm:$0xf]
        %v716 = vld [vmem:[#allocation8 + $0x24] sm:$0xf]
        %v717 = vld [vmem:[#allocation8 + $0x28] sm:$0xf]
        %v718 = vld [vmem:[#allocation8 + $0x2c] sm:$0xf]
        %v719 = vld [vmem:[#allocation8 + $0x30] sm:$0xf]
        %v720 = vld [vmem:[#allocation8 + $0x34] sm:$0xf]
        %v721 = vld [vmem:[#allocation8 + $0x38] sm:$0xf]
        %v722 = vld [vmem:[#allocation8 + $0x3c] sm:$0xf]
        %v723 = vld [vmem:[%s6] sm:$0x1]
        %v725 = vlaneseq
        %v726 = vshrl.u32 %v725, 7
        %v727 = vsub.s32 0, %v726
        %v728 = vrot.slane %v723, %v727
        %v746 = vunpack.c.l.b16 %v707
        %v747 = vunpack.c.l.b16 %v708
        %v748 = vunpack.c.l.b16 %v709
        %v749 = vunpack.c.l.b16 %v710
        %v750 = vunpack.c.l.b16 %v711
        %v751 = vunpack.c.l.b16 %v712
        %v752 = vunpack.c.l.b16 %v713
        %v753 = vunpack.c.l.b16 %v714
        %v754 = vunpack.c.l.b16 %v715
        %v755 = vunpack.c.l.b16 %v716
        %v756 = vunpack.c.l.b16 %v717
        %v757 = vunpack.c.l.b16 %v718
        %v758 = vunpack.c.l.b16 %v719
        %v759 = vunpack.c.l.b16 %v720
        %v760 = vunpack.c.l.b16 %v721
        %v761 = vunpack.c.l.b16 %v722
        %v762 = vpack.c.b16 %v747, %v746
        %v763 = vpack.c.b16 %v749, %v748
        %v764 = vpack.c.b16 %v751, %v750
        %v765 = vpack.c.b16 %v753, %v752
        %v766 = vpack.c.b16 %v755, %v754
        %v767 = vpack.c.b16 %v757, %v756
        %v768 = vpack.c.b16 %v759, %v758
        %v769 = vpack.c.b16 %v761, %v760
        %778 = vmatprep.subr.bf16.mxu0 0
        %779 = vmatpush1.bf16.msra.mxu0 %v762
        %780 = vmatprep.subr.bf16.mxu0 0
        %781 = vmatpush1.bf16.msra.mxu0 %v763
        %782 = vmatprep.subr.bf16.mxu0 0
        %783 = vmatpush1.bf16.msra.mxu0 %v764
        %784 = vmatprep.subr.bf16.mxu0 0
        %785 = vmatpush1.bf16.msra.mxu0 %v765
        %786 = vmatprep.subr.bf16.mxu0 0
        %787 = vmatpush1.bf16.msra.mxu0 %v766
        %788 = vmatprep.subr.bf16.mxu0 0
        %789 = vmatpush1.bf16.msra.mxu0 %v767
        %790 = vmatprep.subr.bf16.mxu0 0
        %791 = vmatpush1.bf16.msra.mxu0 %v768
        %792 = vmatprep.subr.bf16.mxu0 0
        %793 = vmatpush1.bf16.msra.mxu0 %v769
        %794 = vmatprep.subr.bf16.mxu0 0
        %795 = vmatpush1.bf16.msra.mxu0 0
        %796 = vmatprep.subr.bf16.mxu0 0
        %797 = vmatpush1.bf16.msra.mxu0 0
        %798 = vmatprep.subr.bf16.mxu0 0
        %799 = vmatpush1.bf16.msra.mxu0 0
        %800 = vmatprep.subr.bf16.mxu0 0
        %801 = vmatpush1.bf16.msra.mxu0 0
        %802 = vmatprep.subr.bf16.mxu0 0
        %803 = vmatpush1.bf16.msra.mxu0 0
        %804 = vmatprep.subr.bf16.mxu0 0
        %805 = vmatpush1.bf16.msra.mxu0 0
        %806 = vmatprep.subr.bf16.mxu0 0
        %807 = vmatpush1.bf16.msra.mxu0 0
        %808 = vmatprep.subr.bf16.mxu0 0
        %809 = vmatpush1.bf16.msra.mxu0 0
        %810 = vmatprep.mubr.bf16.mxu0 0
        %811 = vmatmul.mubr.bf16.gmra.mrb[0].mxu0 %v706
        %v812 = vpop.f32.mrb[0].mxu0
        %v813 = vadd.f32 %v728, %v812
        %v814 = vpop.f32.mrb[0].mxu0
        %v815 = vpop.f32.mrb[0].mxu0
        %v816 = vadd.f32 %v728, %v815
        %v817 = vpop.f32.mrb[0].mxu0
        %818 = vdwg.mxu0
        %v819 = vmax.f32 %v813, 0.0
        %v820 = vmax.f32 %v816, 0.0
        %v821 = vpack.c.bf16 %v820, %v819
        %v822 = vld [vmem:[#allocation10] sm:$0xf]
        %v823 = vld [vmem:[#allocation10 + $0x4] sm:$0xf]
        %v824 = vld [vmem:[#allocation10 + $0x8] sm:$0xf]
        %v825 = vld [vmem:[#allocation10 + $0xc] sm:$0xf]
        %v826 = vld [vmem:[#allocation10 + $0x10] sm:$0xf]
        %v827 = vld [vmem:[#allocation10 + $0x14] sm:$0xf]
        %v828 = vld [vmem:[#allocation10 + $0x18] sm:$0xf]
        %v829 = vld [vmem:[#allocation10 + $0x1c] sm:$0xf]
        %v830 = vld [vmem:[#allocation10 + $0x20] sm:$0xf]
        %v831 = vld [vmem:[#allocation10 + $0x24] sm:$0xf]
        %v832 = vld [vmem:[#allocation10 + $0x28] sm:$0xf]
        %v833 = vld [vmem:[#allocation10 + $0x2c] sm:$0xf]
        %v834 = vld [vmem:[#allocation10 + $0x30] sm:$0xf]
        %v835 = vld [vmem:[#allocation10 + $0x34] sm:$0xf]
        %v836 = vld [vmem:[#allocation10 + $0x38] sm:$0xf]
        %v837 = vld [vmem:[#allocation10 + $0x3c] sm:$0xf]
        %v838 = vld [vmem:[%s8] sm:$0x1]
        %v840 = vlaneseq
        %v841 = vshrl.u32 %v840, 7
        %v842 = vsub.s32 0, %v841
        %v843 = vrot.slane %v838, %v842
        %v861 = vunpack.c.l.b16 %v822
        %v862 = vunpack.c.l.b16 %v823
        %v863 = vunpack.c.l.b16 %v824
        %v864 = vunpack.c.l.b16 %v825
        %v865 = vunpack.c.l.b16 %v826
        %v866 = vunpack.c.l.b16 %v827
        %v867 = vunpack.c.l.b16 %v828
        %v868 = vunpack.c.l.b16 %v829
        %v869 = vunpack.c.l.b16 %v830
        %v870 = vunpack.c.l.b16 %v831
        %v871 = vunpack.c.l.b16 %v832
        %v872 = vunpack.c.l.b16 %v833
        %v873 = vunpack.c.l.b16 %v834
        %v874 = vunpack.c.l.b16 %v835
        %v875 = vunpack.c.l.b16 %v836
        %v876 = vunpack.c.l.b16 %v837
        %v877 = vpack.c.b16 %v862, %v861
        %v878 = vpack.c.b16 %v864, %v863
        %v879 = vpack.c.b16 %v866, %v865
        %v880 = vpack.c.b16 %v868, %v867
        %v881 = vpack.c.b16 %v870, %v869
        %v882 = vpack.c.b16 %v872, %v871
        %v883 = vpack.c.b16 %v874, %v873
        %v884 = vpack.c.b16 %v876, %v875
        %893 = vmatprep.subr.bf16.mxu0 0
        %894 = vmatpush1.bf16.msra.mxu0 %v877
        %895 = vmatprep.subr.bf16.mxu0 0
        %896 = vmatpush1.bf16.msra.mxu0 %v878
        %897 = vmatprep.subr.bf16.mxu0 0
        %898 = vmatpush1.bf16.msra.mxu0 %v879
        %899 = vmatprep.subr.bf16.mxu0 0
        %900 = vmatpush1.bf16.msra.mxu0 %v880
        %901 = vmatprep.subr.bf16.mxu0 0
        %902 = vmatpush1.bf16.msra.mxu0 %v881
        %903 = vmatprep.subr.bf16.mxu0 0
        %904 = vmatpush1.bf16.msra.mxu0 %v882
        %905 = vmatprep.subr.bf16.mxu0 0
        %906 = vmatpush1.bf16.msra.mxu0 %v883
        %907 = vmatprep.subr.bf16.mxu0 0
        %908 = vmatpush1.bf16.msra.mxu0 %v884
        %909 = vmatprep.subr.bf16.mxu0 0
        %910 = vmatpush1.bf16.msra.mxu0 0
        %911 = vmatprep.subr.bf16.mxu0 0
        %912 = vmatpush1.bf16.msra.mxu0 0
        %913 = vmatprep.subr.bf16.mxu0 0
        %914 = vmatpush1.bf16.msra.mxu0 0
        %915 = vmatprep.subr.bf16.mxu0 0
        %916 = vmatpush1.bf16.msra.mxu0 0
        %917 = vmatprep.subr.bf16.mxu0 0
        %918 = vmatpush1.bf16.msra.mxu0 0
        %919 = vmatprep.subr.bf16.mxu0 0
        %920 = vmatpush1.bf16.msra.mxu0 0
        %921 = vmatprep.subr.bf16.mxu0 0
        %922 = vmatpush1.bf16.msra.mxu0 0
        %923 = vmatprep.subr.bf16.mxu0 0
        %924 = vmatpush1.bf16.msra.mxu0 0
        %925 = vmatprep.mubr.bf16.mxu0 0
        %926 = vmatmul.mubr.bf16.gmra.mrb[0].mxu0 %v821
        %v927 = vpop.f32.mrb[0].mxu0
        %v928 = vadd.f32 %v843, %v927
        %v929 = vpop.f32.mrb[0].mxu0
        %v930 = vpop.f32.mrb[0].mxu0
        %v931 = vadd.f32 %v843, %v930
        %v932 = vpop.f32.mrb[0].mxu0
        %933 = vdwg.mxu0
        %v934 = vpack.c.bf16 %v931, %v928
        %v936 = vunpack.c.l.b16 %v934
        %v937 = vunpack.c.h.b16 %v934
        %v938 = vpack.c.b16 %v936, %v936
        %v939 = vpack.c.b16 %v937, %v937
        %942 = vst [vmem:[%s408] sm:$0xf] %v938
        %943 = vst [vmem:[%s408 + $0x4] sm:$0xf] %v939
        %s944 = sand.u32 %s230, 1
        %s945 = scalar_lea.sflag [#allocation4], %s944
        %s946 = sand.u32 %s230, 1
        %s947 = smul.addr %s946, 8
        %s948 = scalar_lea.vmem [#allocation11], %s947
        // Predicated region
        $region77: #{tpu_custom_call.1} parent=55 // pred_check
          %p949 = pneg %p240
        $region78: #{tpu_custom_call.1} parent=55 // pred_check_branch
          %951 = sbr.rel (%p949) target = $region80
        $region79: #{tpu_custom_call.1} parent=55 // pred_region
          %s952 = smul.u32 2, %s28
          %s954 = ssub.s32 128, 128
          %955 = vsyncadd %s945, %s954
          %s956 = smul.addr %s952, 64
          %s957 = scalar_lea.hbm %s9, %s956
          %s958 = sshll.u32 %s948, 4
          %s959 = int_to_ptr.vmem [resolvable:$true] %s958
          %964 = dma.vmem_to_hbm [thread:$0]  %s959, 128, %s957, %s945, 64, 64, 4
        $region80: #{tpu_custom_call.1} parent=55 // pred_fallthru
          _
      $region56: #{tpu_custom_call.1} parent=5 // pred_fallthru
        _
      %p965 = scmp.le.s32.totalorder 2, %s23
      // Predicated region
      $region81: #{tpu_custom_call.1} parent=5 // pred_check
        %p966 = pneg %p965
      $region82: #{tpu_custom_call.1} parent=5 // pred_check_branch
        %968 = sbr.rel (%p966) target = $region84
      $region83: #{tpu_custom_call.1} parent=5 // pred_region
        %s969 = ssub.s32 %s23, 2
        // Predicated region
        $region85: #{tpu_custom_call.1} parent=83 // pred_check
          %p970 = pneg %p246
        $region86: #{tpu_custom_call.1} parent=83 // pred_check_branch
          %972 = sbr.rel (%p970) target = $region88
        $region87: #{tpu_custom_call.1} parent=83 // pred_region
          %s973 = sand.u32 %s231, 1
          %s974 = scalar_lea.sflag [#allocation4], %s973
          %s975 = sand.u32 %s231, 1
          %s976 = smul.addr %s975, 8
          %s977 = scalar_lea.vmem [#allocation11], %s976
          %978 = dma.done %s974, 128
        $region88: #{tpu_custom_call.1} parent=83 // pred_fallthru
          _
      $region84: #{tpu_custom_call.1} parent=5 // pred_fallthru
        _
    $region6: #{tpu_custom_call.1} parent=1 // loop_footer
      %s27 = sadd.s32 1, %s23
    $region7: #{tpu_custom_call.1} parent=1 // loop_footer_branch
      %22 = sbr.rel target = $region3
    $region8: #{tpu_custom_call.1} parent=1 // loop_exit
      _
    %979 = vsyncpa [#allocation3], 1
    %s980 = scalar_lea.sflag [#allocation3], 1
    %981 = vsyncpa %s980, 1
    %982 = vsyncpa [#allocation6], 1
    %983 = vsyncpa [#allocation9], 1
    %984 = vsyncpa [#allocation4], 1
    %s985 = scalar_lea.sflag [#allocation4], 1
    %986 = vsyncpa %s985, 1

</llo_original>
